<compile_context>
chip_gen: v6e
topology: v6e:2x2x1
jax: 0.10.0
libtpu: 0.0.40
codegen_flags: <defaults>
</compile_context>

<pallas_src>
import numpy as np
import jax
import jax.numpy as jnp
from jax.experimental import pallas as pl
from jax.experimental.pallas import tpu as pltpu


def _round_up(n, m):
    return ((n + m - 1) // m) * m


def _default_act_dtype():
    """bf16 epilogue on v6e/v7x (bf16 VPU); f32 on v5e/older (no bf16 VALU)."""
    try:
        kind = jax.devices()[0].device_kind.lower()
    except Exception:
        return jnp.float32
    return jnp.bfloat16 if ("v6" in kind or "v7" in kind) else jnp.float32


def _vmem_capacity_bytes():
    try:
        return int(pltpu.get_tpu_info().vmem_capacity_bytes)
    except Exception:
        return 64 << 20  # conservative (v7x per-TensorCore VMEM)


def _make_mlp_kernel(relu_flags, epi_dtypes):
    """Fused kernel for a consecutive group of linear layers.

    Ref order: (x_ref, w0_ref, b0_ref, w1_ref, b1_ref, ..., out_ref).
      x_ref  : (BM, D_in)       bf16 activation tile (batch tiled)
      wl_ref : (D_l, Dp_{l+1})  bf16 weight (padded rows/cols are exact zeros)
      bl_ref : (1, Dp_{l+1})    bias in epi_dtypes[l]
      out_ref: (BM, Dp_out)     group output tile (lane-dense)
    """
    n = len(relu_flags)

    def kernel(*refs):
        x_ref = refs[0]
        out_ref = refs[1 + 2 * n]
        h = x_ref[...]                                   # bf16, true width
        for l in range(n):                               # statically unrolled
            w_ref = refs[1 + 2 * l]
            b_ref = refs[2 + 2 * l]
            # MXU-native bf16 x bf16 -> f32 accumulate (astype is a no-op when
            # h is already bf16); bias add + ReLU in epi_dtypes[l].
            acc = jnp.dot(h.astype(jnp.bfloat16), w_ref[...],
                          preferred_element_type=jnp.float32)
            h = acc.astype(epi_dtypes[l]) + b_ref[...]
            if relu_flags[l]:
                h = jnp.maximum(h, 0.0)
        out_ref[...] = h.astype(out_ref.dtype)

    return kernel


def make_mlp_forward(weights, biases, relu_flags, *, block_m=512,
                     act_dtype=None, out_dtype=jnp.float32):
    """Builds a jitted forward pass for the MLP (norm='none', activ='relu').

    weights[l]: (D_in_l, D_out_l) math layout (== PyTorch weight.T)
    biases[l]:  (D_out_l,)
    relu_flags[l]: apply ReLU after layer l.
    Parameters are padded / cast to bf16 once here and reused every call.
    """
    if act_dtype is None:
        act_dtype = _default_act_dtype()

    n_layers = len(weights)
    relu_flags = tuple(bool(f) for f in relu_flags)
    dims = [int(weights[0].shape[0])] + [int(w.shape[1]) for w in weights]
    # Lane-dense (multiple-of-128) widths for every layer OUTPUT; the network
    # input keeps its true width so the x HBM read is not inflated by padding.
    pdims = [dims[0]] + [_round_up(d, 128) for d in dims[1:]]

    # Final layer epilogue stays f32 (output precision); hidden layers use
    # the chip-appropriate epilogue dtype.
    epi_dtypes = tuple(jnp.float32 if l == n_layers - 1 else act_dtype
                       for l in range(n_layers))

    # ---- pre-pad / pre-cast parameters ONCE (padding is exact zeros) -------
    w_pad, b_pad = [], []
    for l, (w, b) in enumerate(zip(weights, biases)):
        di, do = int(w.shape[0]), int(w.shape[1])
        wp = (jnp.zeros((pdims[l], pdims[l + 1]), jnp.float32)
              .at[:di, :do].set(jnp.asarray(w, jnp.float32))
              .astype(jnp.bfloat16))
        bp = (jnp.zeros((1, pdims[l + 1]), jnp.float32)
              .at[0, :do].set(jnp.asarray(b, jnp.float32))
              .astype(epi_dtypes[l]))
        w_pad.append(wp)
        b_pad.append(bp)

    # ---- VMEM budget: keep all layers resident if they fit, else split into
    # consecutive layer groups (one pallas_call each; activations round-trip
    # HBM in bf16 between groups).  Matters for large dims on v7x (64 MiB).
    param_bytes = [int(w.size) * 2 + int(b.size) * b.dtype.itemsize
                   for w, b in zip(w_pad, b_pad)]
    budget = _vmem_capacity_bytes() // 2
    groups, cur, cur_bytes = [], [], 0
    for l in range(n_layers):
        if cur and cur_bytes + param_bytes[l] > budget:
            groups.append(cur)
            cur, cur_bytes = [], 0
        cur.append(l)
        cur_bytes += param_bytes[l]
    groups.append(cur)

    def build(single_buffer_params):

        def _pspec(shape):
            # Resident (grid-invariant) parameter block.
            if single_buffer_params:
                return pl.BlockSpec(shape, lambda i: (0, 0),
                                    pipeline_mode=pl.Buffered(1))
            return pl.BlockSpec(shape, lambda i: (0, 0))

        def forward(x):
            N = x.shape[0]
            x2d = jnp.reshape(x, (N, -1))
            assert x2d.shape[1] == dims[0], "input feature size mismatch"

            # Batch tiling: multiples of 16 (unmasked bf16 sublane tiling);
            # keep >= 2 grid steps when the batch allows it (v7x has 2 TCs).
            n16 = _round_up(N, 16)
            bm = _round_up(min(block_m, n16), 16)
            if n16 >= 32 and (_round_up(N, bm) // bm) < 2:
                bm = _round_up((n16 + 1) // 2, 16)
            npad = _round_up(N, bm)
            grid = (npad // bm,)

            # x enters the kernel as bf16 at its true feature width.
            h = jnp.pad(x2d.astype(jnp.bfloat16), ((0, npad - N), (0, 0)))

            for gi, group in enumerate(groups):
                l0, l1 = group[0], group[-1]
                is_last_group = gi == len(groups) - 1
                g_out_dtype = out_dtype if is_last_group else jnp.bfloat16
                out_w = pdims[l1 + 1]

                inputs = [h]
                in_specs = [pl.BlockSpec((bm, pdims[l0]), lambda i: (i, 0))]
                for l in group:
                    inputs += [w_pad[l], b_pad[l]]
                    in_specs += [_pspec((pdims[l], pdims[l + 1])),
                                 _pspec((1, pdims[l + 1]))]

                # Explicit VMEM limit: resident params (x2 to be safe if not
                # single-buffered) + double-buffered act/out tiles + live f32
                # intermediates + headroom.
                g_param = sum(param_bytes[l] for l in group)
                act_b = 2 * bm * pdims[l0] * 2 \
                        + 2 * bm * out_w * jnp.dtype(g_out_dtype).itemsize
                live_b = 4 * bm * max(pdims[l0:l1 + 2]) * 4
                vmem_limit = int(min(2 * g_param + act_b + live_b + (4 << 20),
                                     int(_vmem_capacity_bytes() * 0.9)))

                h = pl.pallas_call(
                    _make_mlp_kernel(relu_flags[l0:l1 + 1],
                                     epi_dtypes[l0:l1 + 1]),
                    out_shape=jax.ShapeDtypeStruct((npad, out_w), g_out_dtype),
                    grid_spec=pltpu.PrefetchScalarGridSpec(
                        num_scalar_prefetch=0,
                        grid=grid,
                        in_specs=in_specs,
                        out_specs=pl.BlockSpec((bm, out_w), lambda i: (i, 0)),
                    ),
                    compiler_params=pltpu.CompilerParams(
                        dimension_semantics=("parallel",),
                        vmem_limit_bytes=vmem_limit),
                )(*inputs)

            return h[:N, :dims[-1]].astype(out_dtype)

        return jax.jit(forward)

    fwd = build(True)
    try:
        # Warm-up; if pipeline_mode=pl.Buffered(1) is rejected by this
        # JAX/Mosaic version, rebuild with default (double-buffered) params.
        jax.block_until_ready(fwd(jnp.zeros((16, dims[0]), jnp.float32)))
    except Exception:
        fwd = build(False)
    return fwd


def mlp_reference(x, weights, biases, relu_flags):
    """Pure-JAX f32 reference matching the PyTorch MLP forward."""
    h = jnp.reshape(x, (x.shape[0], -1)).astype(jnp.float32)
    for w, b, act in zip(weights, biases, relu_flags):
        h = h @ jnp.asarray(w, jnp.float32) + jnp.asarray(b, jnp.float32)
        if act:
            h = jnp.maximum(h, 0.0)
    return h


if __name__ == "__main__":
    key = jax.random.PRNGKey(0)

    # MLP(input_dim=16, output_dim=32, dim=64, n_blk=4, norm='none', activ='relu')
    # Input shaped like a style code (N, input_dim, 1, 1); forward flattens it.
    N, input_dim, dim, output_dim, n_blk = 2, 16, 64, 32, 4
    layer_dims = [input_dim] + [dim] * (n_blk - 1) + [output_dim]
    relu_flags = [True] * (n_blk - 1) + [False]

    keys = jax.random.split(key, 2 * n_blk + 1)
    x = jax.random.normal(keys[0], (N, input_dim, 1, 1), jnp.float32)

    weights, biases = [], []
    for l in range(n_blk):
        fan_in = layer_dims[l]
        w = jax.random.normal(keys[2 * l + 1],
                              (layer_dims[l], layer_dims[l + 1]),
                              jnp.float32) / np.sqrt(fan_in)
        b = 0.1 * jax.random.normal(keys[2 * l + 2],
                                    (layer_dims[l + 1],), jnp.float32)
        weights.append(w)
        biases.append(b)

    mlp_fwd = make_mlp_forward(weights, biases, relu_flags)

    out = jax.block_until_ready(mlp_fwd(x))
    ref = jax.block_until_ready(mlp_reference(x, weights, biases, relu_flags))

    # Tolerance accounts for bf16 matmul inputs on the MXU (f32 accumulation)
    # and the bf16 bias/ReLU epilogue on v6e/v7x.
    np.testing.assert_allclose(np.asarray(out), np.asarray(ref),
                               rtol=4e-2, atol=4e-2)
    print("KERNEL_OK")
</pallas_src>

<mosaic_0001>
module attributes {stable_mosaic.version = 11 : i64} {
  func.func @kernel(%arg0: i32, %arg1: memref<16x16xbf16, #tpu.memory_space<vmem>>, %arg2: memref<16x128xbf16, #tpu.memory_space<vmem>>, %arg3: memref<1x128xf32, #tpu.memory_space<vmem>>, %arg4: memref<128x128xbf16, #tpu.memory_space<vmem>>, %arg5: memref<1x128xf32, #tpu.memory_space<vmem>>, %arg6: memref<128x128xbf16, #tpu.memory_space<vmem>>, %arg7: memref<1x128xf32, #tpu.memory_space<vmem>>, %arg8: memref<128x128xbf16, #tpu.memory_space<vmem>>, %arg9: memref<1x128xf32, #tpu.memory_space<vmem>>, %arg10: memref<16x128xf32, #tpu.memory_space<vmem>>) attributes {dimension_semantics = [#tpu.dimension_semantics<parallel>], iteration_bounds = array<i64: 1>, scalar_prefetch = 0 : i64, scratch_operands = 0 : i64, tpu.core_type = #tpu.core_type<tc>, window_params = [{transform_indices = @transform_0, window_bounds = array<i64: 16, 16>}, {pipeline_mode = #tpu.pipeline_mode<synchronous>, transform_indices = @transform_1, window_bounds = array<i64: 16, 128>}, {pipeline_mode = #tpu.pipeline_mode<synchronous>, transform_indices = @transform_2, window_bounds = array<i64: 1, 128>}, {pipeline_mode = #tpu.pipeline_mode<synchronous>, transform_indices = @transform_3, window_bounds = array<i64: 128, 128>}, {pipeline_mode = #tpu.pipeline_mode<synchronous>, transform_indices = @transform_4, window_bounds = array<i64: 1, 128>}, {pipeline_mode = #tpu.pipeline_mode<synchronous>, transform_indices = @transform_5, window_bounds = array<i64: 128, 128>}, {pipeline_mode = #tpu.pipeline_mode<synchronous>, transform_indices = @transform_6, window_bounds = array<i64: 1, 128>}, {pipeline_mode = #tpu.pipeline_mode<synchronous>, transform_indices = @transform_7, window_bounds = array<i64: 128, 128>}, {pipeline_mode = #tpu.pipeline_mode<synchronous>, transform_indices = @transform_8, window_bounds = array<i64: 1, 128>}, {transform_indices = @transform_9, window_bounds = array<i64: 16, 128>}]} {
    %c0 = arith.constant 0 : index
    %c0_0 = arith.constant 0 : index
    %0 = vector.load %arg1[%c0, %c0_0] : memref<16x16xbf16, #tpu.memory_space<vmem>>, vector<16x16xbf16>
    %c0_1 = arith.constant 0 : index
    %c0_2 = arith.constant 0 : index
    %1 = vector.load %arg2[%c0_1, %c0_2] : memref<16x128xbf16, #tpu.memory_space<vmem>>, vector<16x128xbf16>
    %cst = arith.constant dense<0.000000e+00> : vector<16x128xf32>
    %2 = tpu.matmul %0, %1, %cst {dimension_numbers = #tpu.dot_dimension_numbers<[1], [0], [0], [1], [0, 0, 1, 1], [], []>} : vector<16x16xbf16>, vector<16x128xbf16>, vector<16x128xf32> -> vector<16x128xf32>
    %c0_3 = arith.constant 0 : index
    %c0_4 = arith.constant 0 : index
    %3 = vector.load %arg3[%c0_3, %c0_4] : memref<1x128xf32, #tpu.memory_space<vmem>>, vector<1x128xf32>
    %4 = vector.broadcast %3 : vector<1x128xf32> to vector<16x128xf32>
    %5 = arith.addf %2, %4 : vector<16x128xf32>
    %cst_5 = arith.constant 0.000000e+00 : f32
    %6 = vector.broadcast %cst_5 : f32 to vector<16x128xf32>
    %7 = arith.maximumf %5, %6 : vector<16x128xf32>
    %8 = arith.truncf %7 : vector<16x128xf32> to vector<16x128xbf16>
    %c0_6 = arith.constant 0 : index
    %c0_7 = arith.constant 0 : index
    %9 = vector.load %arg4[%c0_6, %c0_7] : memref<128x128xbf16, #tpu.memory_space<vmem>>, vector<128x128xbf16>
    %cst_8 = arith.constant dense<0.000000e+00> : vector<16x128xf32>
    %10 = tpu.matmul %8, %9, %cst_8 {dimension_numbers = #tpu.dot_dimension_numbers<[1], [0], [0], [1], [0, 0, 1, 1], [], []>} : vector<16x128xbf16>, vector<128x128xbf16>, vector<16x128xf32> -> vector<16x128xf32>
    %c0_9 = arith.constant 0 : index
    %c0_10 = arith.constant 0 : index
    %11 = vector.load %arg5[%c0_9, %c0_10] : memref<1x128xf32, #tpu.memory_space<vmem>>, vector<1x128xf32>
    %12 = vector.broadcast %11 : vector<1x128xf32> to vector<16x128xf32>
    %13 = arith.addf %10, %12 : vector<16x128xf32>
    %cst_11 = arith.constant 0.000000e+00 : f32
    %14 = vector.broadcast %cst_11 : f32 to vector<16x128xf32>
    %15 = arith.maximumf %13, %14 : vector<16x128xf32>
    %16 = arith.truncf %15 : vector<16x128xf32> to vector<16x128xbf16>
    %c0_12 = arith.constant 0 : index
    %c0_13 = arith.constant 0 : index
    %17 = vector.load %arg6[%c0_12, %c0_13] : memref<128x128xbf16, #tpu.memory_space<vmem>>, vector<128x128xbf16>
    %cst_14 = arith.constant dense<0.000000e+00> : vector<16x128xf32>
    %18 = tpu.matmul %16, %17, %cst_14 {dimension_numbers = #tpu.dot_dimension_numbers<[1], [0], [0], [1], [0, 0, 1, 1], [], []>} : vector<16x128xbf16>, vector<128x128xbf16>, vector<16x128xf32> -> vector<16x128xf32>
    %c0_15 = arith.constant 0 : index
    %c0_16 = arith.constant 0 : index
    %19 = vector.load %arg7[%c0_15, %c0_16] : memref<1x128xf32, #tpu.memory_space<vmem>>, vector<1x128xf32>
    %20 = vector.broadcast %19 : vector<1x128xf32> to vector<16x128xf32>
    %21 = arith.addf %18, %20 : vector<16x128xf32>
    %cst_17 = arith.constant 0.000000e+00 : f32
    %22 = vector.broadcast %cst_17 : f32 to vector<16x128xf32>
    %23 = arith.maximumf %21, %22 : vector<16x128xf32>
    %24 = arith.truncf %23 : vector<16x128xf32> to vector<16x128xbf16>
    %c0_18 = arith.constant 0 : index
    %c0_19 = arith.constant 0 : index
    %25 = vector.load %arg8[%c0_18, %c0_19] : memref<128x128xbf16, #tpu.memory_space<vmem>>, vector<128x128xbf16>
    %cst_20 = arith.constant dense<0.000000e+00> : vector<16x128xf32>
    %26 = tpu.matmul %24, %25, %cst_20 {dimension_numbers = #tpu.dot_dimension_numbers<[1], [0], [0], [1], [0, 0, 1, 1], [], []>} : vector<16x128xbf16>, vector<128x128xbf16>, vector<16x128xf32> -> vector<16x128xf32>
    %c0_21 = arith.constant 0 : index
    %c0_22 = arith.constant 0 : index
    %27 = vector.load %arg9[%c0_21, %c0_22] : memref<1x128xf32, #tpu.memory_space<vmem>>, vector<1x128xf32>
    %28 = vector.broadcast %27 : vector<1x128xf32> to vector<16x128xf32>
    %29 = arith.addf %26, %28 : vector<16x128xf32>
    %c0_23 = arith.constant 0 : index
    %c0_24 = arith.constant 0 : index
    %30 = vector.load %arg10[%c0_23, %c0_24] : memref<16x128xf32, #tpu.memory_space<vmem>>, vector<16x128xf32>
    tpu.vector_store %arg10[%c0_23, %c0_24], %29 {strides = array<i32>} : memref<16x128xf32, #tpu.memory_space<vmem>>, vector<16x128xf32>,
    return
  }
  func.func @transform_0(%arg0: i32) -> (i32, i32) {
    %c0_i32 = arith.constant 0 : i32
    %c0_i32_0 = arith.constant 0 : i32
    return %arg0, %c0_i32 : i32, i32
  }
  func.func @transform_1(%arg0: i32) -> (i32, i32) {
    %c0_i32 = arith.constant 0 : i32
    %c0_i32_0 = arith.constant 0 : i32
    %c0_i32_1 = arith.constant 0 : i32
    return %c0_i32, %c0_i32_0 : i32, i32
  }
  func.func @transform_2(%arg0: i32) -> (i32, i32) {
    %c0_i32 = arith.constant 0 : i32
    %c0_i32_0 = arith.constant 0 : i32
    %c0_i32_1 = arith.constant 0 : i32
    return %c0_i32, %c0_i32_0 : i32, i32
  }
  func.func @transform_3(%arg0: i32) -> (i32, i32) {
    %c0_i32 = arith.constant 0 : i32
    %c0_i32_0 = arith.constant 0 : i32
    %c0_i32_1 = arith.constant 0 : i32
    return %c0_i32, %c0_i32_0 : i32, i32
  }
  func.func @transform_4(%arg0: i32) -> (i32, i32) {
    %c0_i32 = arith.constant 0 : i32
    %c0_i32_0 = arith.constant 0 : i32
    %c0_i32_1 = arith.constant 0 : i32
    return %c0_i32, %c0_i32_0 : i32, i32
  }
  func.func @transform_5(%arg0: i32) -> (i32, i32) {
    %c0_i32 = arith.constant 0 : i32
    %c0_i32_0 = arith.constant 0 : i32
    %c0_i32_1 = arith.constant 0 : i32
    return %c0_i32, %c0_i32_0 : i32, i32
  }
  func.func @transform_6(%arg0: i32) -> (i32, i32) {
    %c0_i32 = arith.constant 0 : i32
    %c0_i32_0 = arith.constant 0 : i32
    %c0_i32_1 = arith.constant 0 : i32
    return %c0_i32, %c0_i32_0 : i32, i32
  }
  func.func @transform_7(%arg0: i32) -> (i32, i32) {
    %c0_i32 = arith.constant 0 : i32
    %c0_i32_0 = arith.constant 0 : i32
    %c0_i32_1 = arith.constant 0 : i32
    return %c0_i32, %c0_i32_0 : i32, i32
  }
  func.func @transform_8(%arg0: i32) -> (i32, i32) {
    %c0_i32 = arith.constant 0 : i32
    %c0_i32_0 = arith.constant 0 : i32
    %c0_i32_1 = arith.constant 0 : i32
    return %c0_i32, %c0_i32_0 : i32, i32
  }
  func.func @transform_9(%arg0: i32) -> (i32, i32) {
    %c0_i32 = arith.constant 0 : i32
    %c0_i32_0 = arith.constant 0 : i32
    return %arg0, %c0_i32 : i32, i32
  }
}

module attributes {stable_mosaic.version = 11 : i64} {
  func.func @kernel(%arg0: i32, %arg1: memref<16x16xbf16, #tpu.memory_space<vmem>>, %arg2: memref<16x128xbf16, #tpu.memory_space<vmem>>, %arg3: memref<1x128xf32, #tpu.memory_space<vmem>>, %arg4: memref<128x128xbf16, #tpu.memory_space<vmem>>, %arg5: memref<1x128xf32, #tpu.memory_space<vmem>>, %arg6: memref<128x128xbf16, #tpu.memory_space<vmem>>, %arg7: memref<1x128xf32, #tpu.memory_space<vmem>>, %arg8: memref<128x128xbf16, #tpu.memory_space<vmem>>, %arg9: memref<1x128xf32, #tpu.memory_space<vmem>>, %arg10: memref<16x128xf32, #tpu.memory_space<vmem>>) attributes {dimension_semantics = [#tpu.dimension_semantics<parallel>], iteration_bounds = array<i64: 1>, scalar_prefetch = 0 : i64, scratch_operands = 0 : i64, tpu.core_type = #tpu.core_type<tc>, window_params = [{transform_indices = @transform_0, window_bounds = array<i64: 16, 16>}, {pipeline_mode = #tpu.pipeline_mode<synchronous>, transform_indices = @transform_1, window_bounds = array<i64: 16, 128>}, {pipeline_mode = #tpu.pipeline_mode<synchronous>, transform_indices = @transform_2, window_bounds = array<i64: 1, 128>}, {pipeline_mode = #tpu.pipeline_mode<synchronous>, transform_indices = @transform_3, window_bounds = array<i64: 128, 128>}, {pipeline_mode = #tpu.pipeline_mode<synchronous>, transform_indices = @transform_4, window_bounds = array<i64: 1, 128>}, {pipeline_mode = #tpu.pipeline_mode<synchronous>, transform_indices = @transform_5, window_bounds = array<i64: 128, 128>}, {pipeline_mode = #tpu.pipeline_mode<synchronous>, transform_indices = @transform_6, window_bounds = array<i64: 1, 128>}, {pipeline_mode = #tpu.pipeline_mode<synchronous>, transform_indices = @transform_7, window_bounds = array<i64: 128, 128>}, {pipeline_mode = #tpu.pipeline_mode<synchronous>, transform_indices = @transform_8, window_bounds = array<i64: 1, 128>}, {transform_indices = @transform_9, window_bounds = array<i64: 16, 128>}]} {
    %c0 = arith.constant 0 : index
    %c0_0 = arith.constant 0 : index
    %0 = vector.load %arg1[%c0, %c0_0] : memref<16x16xbf16, #tpu.memory_space<vmem>>, vector<16x16xbf16>
    %c0_1 = arith.constant 0 : index
    %c0_2 = arith.constant 0 : index
    %1 = vector.load %arg2[%c0_1, %c0_2] : memref<16x128xbf16, #tpu.memory_space<vmem>>, vector<16x128xbf16>
    %cst = arith.constant dense<0.000000e+00> : vector<16x128xf32>
    %2 = tpu.matmul %0, %1, %cst {dimension_numbers = #tpu.dot_dimension_numbers<[1], [0], [0], [1], [0, 0, 1, 1], [], []>} : vector<16x16xbf16>, vector<16x128xbf16>, vector<16x128xf32> -> vector<16x128xf32>
    %c0_3 = arith.constant 0 : index
    %c0_4 = arith.constant 0 : index
    %3 = vector.load %arg3[%c0_3, %c0_4] : memref<1x128xf32, #tpu.memory_space<vmem>>, vector<1x128xf32>
    %4 = vector.broadcast %3 : vector<1x128xf32> to vector<16x128xf32>
    %5 = arith.addf %2, %4 : vector<16x128xf32>
    %cst_5 = arith.constant 0.000000e+00 : f32
    %6 = vector.broadcast %cst_5 : f32 to vector<16x128xf32>
    %7 = arith.maximumf %5, %6 : vector<16x128xf32>
    %8 = arith.truncf %7 : vector<16x128xf32> to vector<16x128xbf16>
    %c0_6 = arith.constant 0 : index
    %c0_7 = arith.constant 0 : index
    %9 = vector.load %arg4[%c0_6, %c0_7] : memref<128x128xbf16, #tpu.memory_space<vmem>>, vector<128x128xbf16>
    %cst_8 = arith.constant dense<0.000000e+00> : vector<16x128xf32>
    %10 = tpu.matmul %8, %9, %cst_8 {dimension_numbers = #tpu.dot_dimension_numbers<[1], [0], [0], [1], [0, 0, 1, 1], [], []>} : vector<16x128xbf16>, vector<128x128xbf16>, vector<16x128xf32> -> vector<16x128xf32>
    %c0_9 = arith.constant 0 : index
    %c0_10 = arith.constant 0 : index
    %11 = vector.load %arg5[%c0_9, %c0_10] : memref<1x128xf32, #tpu.memory_space<vmem>>, vector<1x128xf32>
    %12 = vector.broadcast %11 : vector<1x128xf32> to vector<16x128xf32>
    %13 = arith.addf %10, %12 : vector<16x128xf32>
    %cst_11 = arith.constant 0.000000e+00 : f32
    %14 = vector.broadcast %cst_11 : f32 to vector<16x128xf32>
    %15 = arith.maximumf %13, %14 : vector<16x128xf32>
    %16 = arith.truncf %15 : vector<16x128xf32> to vector<16x128xbf16>
    %c0_12 = arith.constant 0 : index
    %c0_13 = arith.constant 0 : index
    %17 = vector.load %arg6[%c0_12, %c0_13] : memref<128x128xbf16, #tpu.memory_space<vmem>>, vector<128x128xbf16>
    %cst_14 = arith.constant dense<0.000000e+00> : vector<16x128xf32>
    %18 = tpu.matmul %16, %17, %cst_14 {dimension_numbers = #tpu.dot_dimension_numbers<[1], [0], [0], [1], [0, 0, 1, 1], [], []>} : vector<16x128xbf16>, vector<128x128xbf16>, vector<16x128xf32> -> vector<16x128xf32>
    %c0_15 = arith.constant 0 : index
    %c0_16 = arith.constant 0 : index
    %19 = vector.load %arg7[%c0_15, %c0_16] : memref<1x128xf32, #tpu.memory_space<vmem>>, vector<1x128xf32>
    %20 = vector.broadcast %19 : vector<1x128xf32> to vector<16x128xf32>
    %21 = arith.addf %18, %20 : vector<16x128xf32>
    %cst_17 = arith.constant 0.000000e+00 : f32
    %22 = vector.broadcast %cst_17 : f32 to vector<16x128xf32>
    %23 = arith.maximumf %21, %22 : vector<16x128xf32>
    %24 = arith.truncf %23 : vector<16x128xf32> to vector<16x128xbf16>
    %c0_18 = arith.constant 0 : index
    %c0_19 = arith.constant 0 : index
    %25 = vector.load %arg8[%c0_18, %c0_19] : memref<128x128xbf16, #tpu.memory_space<vmem>>, vector<128x128xbf16>
    %cst_20 = arith.constant dense<0.000000e+00> : vector<16x128xf32>
    %26 = tpu.matmul %24, %25, %cst_20 {dimension_numbers = #tpu.dot_dimension_numbers<[1], [0], [0], [1], [0, 0, 1, 1], [], []>} : vector<16x128xbf16>, vector<128x128xbf16>, vector<16x128xf32> -> vector<16x128xf32>
    %c0_21 = arith.constant 0 : index
    %c0_22 = arith.constant 0 : index
    %27 = vector.load %arg9[%c0_21, %c0_22] : memref<1x128xf32, #tpu.memory_space<vmem>>, vector<1x128xf32>
    %28 = vector.broadcast %27 : vector<1x128xf32> to vector<16x128xf32>
    %29 = arith.addf %26, %28 : vector<16x128xf32>
    %c0_23 = arith.constant 0 : index
    %c0_24 = arith.constant 0 : index
    %30 = vector.load %arg10[%c0_23, %c0_24] : memref<16x128xf32, #tpu.memory_space<vmem>>, vector<16x128xf32>
    tpu.vector_store %arg10[%c0_23, %c0_24], %29 {strides = array<i32>} : memref<16x128xf32, #tpu.memory_space<vmem>>, vector<16x128xf32>,
    return
  }
  func.func @transform_0(%arg0: i32) -> (i32, i32) {
    %c0_i32 = arith.constant 0 : i32
    %c0_i32_0 = arith.constant 0 : i32
    return %arg0, %c0_i32 : i32, i32
  }
  func.func @transform_1(%arg0: i32) -> (i32, i32) {
    %c0_i32 = arith.constant 0 : i32
    %c0_i32_0 = arith.constant 0 : i32
    %c0_i32_1 = arith.constant 0 : i32
    return %c0_i32, %c0_i32_0 : i32, i32
  }
  func.func @transform_2(%arg0: i32) -> (i32, i32) {
    %c0_i32 = arith.constant 0 : i32
    %c0_i32_0 = arith.constant 0 : i32
    %c0_i32_1 = arith.constant 0 : i32
    return %c0_i32, %c0_i32_0 : i32, i32
  }
  func.func @transform_3(%arg0: i32) -> (i32, i32) {
    %c0_i32 = arith.constant 0 : i32
    %c0_i32_0 = arith.constant 0 : i32
    %c0_i32_1 = arith.constant 0 : i32
    return %c0_i32, %c0_i32_0 : i32, i32
  }
  func.func @transform_4(%arg0: i32) -> (i32, i32) {
    %c0_i32 = arith.constant 0 : i32
    %c0_i32_0 = arith.constant 0 : i32
    %c0_i32_1 = arith.constant 0 : i32
    return %c0_i32, %c0_i32_0 : i32, i32
  }
  func.func @transform_5(%arg0: i32) -> (i32, i32) {
    %c0_i32 = arith.constant 0 : i32
    %c0_i32_0 = arith.constant 0 : i32
    %c0_i32_1 = arith.constant 0 : i32
    return %c0_i32, %c0_i32_0 : i32, i32
  }
  func.func @transform_6(%arg0: i32) -> (i32, i32) {
    %c0_i32 = arith.constant 0 : i32
    %c0_i32_0 = arith.constant 0 : i32
    %c0_i32_1 = arith.constant 0 : i32
    return %c0_i32, %c0_i32_0 : i32, i32
  }
  func.func @transform_7(%arg0: i32) -> (i32, i32) {
    %c0_i32 = arith.constant 0 : i32
    %c0_i32_0 = arith.constant 0 : i32
    %c0_i32_1 = arith.constant 0 : i32
    return %c0_i32, %c0_i32_0 : i32, i32
  }
  func.func @transform_8(%arg0: i32) -> (i32, i32) {
    %c0_i32 = arith.constant 0 : i32
    %c0_i32_0 = arith.constant 0 : i32
    %c0_i32_1 = arith.constant 0 : i32
    return %c0_i32, %c0_i32_0 : i32, i32
  }
  func.func @transform_9(%arg0: i32) -> (i32, i32) {
    %c0_i32 = arith.constant 0 : i32
    %c0_i32_0 = arith.constant 0 : i32
    return %arg0, %c0_i32 : i32, i32
  }
}

</mosaic_0001>

<llo_original>
// kernel: forward.1
$region0: #{forward.1}
  #allocation0 [shape = 'u32[]', space=smem, size = 0x4, offset = 0x4, fixed_abs, tag = 'smem constant byte address 0x4 - core index']
  #allocation1 [shape = 'u32[144,128]{1,0:T(1,128)}', space=vmem, size = 0x12000, scoped, tag = 'internal scratch']
  %s0 = inlined_call_operand.vmem [shape: bf16[16,16], index: 0, kind: input, shape index: {}]
  %s1 = inlined_call_operand.vmem [shape: bf16[16,128], index: 1, kind: input, shape index: {}]
  %s2 = inlined_call_operand.vmem [shape: f32[1,128], index: 2, kind: input, shape index: {}]
  %s3 = inlined_call_operand.hbm [shape: bf16[128,128], index: 3, kind: input, shape index: {}]
  %s4 = inlined_call_operand.vmem [shape: f32[1,128], index: 4, kind: input, shape index: {}]
  %s5 = inlined_call_operand.hbm [shape: bf16[128,128], index: 5, kind: input, shape index: {}]
  %s6 = inlined_call_operand.vmem [shape: f32[1,128], index: 6, kind: input, shape index: {}]
  %s7 = inlined_call_operand.hbm [shape: bf16[128,128], index: 7, kind: input, shape index: {}]
  %s8 = inlined_call_operand.vmem [shape: f32[1,128], index: 8, kind: input, shape index: {}]
  %s9 = inlined_call_operand.hbm [shape: f32[16,128], index: 9, kind: output, shape index: {}]
  %s10 = sld [smem:[#allocation0]]
  $region58: #{forward.1} parent=0
    _
  %s12 = ssub.s32 1, %s10
  %s13 = scalar_select 0, %s12, %s10
  $region1: #{forward.1} parent=0
    #allocation2 [shape = 'u8[32768]{0}', space=vmem, size = 0x8000, scoped, tag = 'input window, operand 3, single buffered']
    #allocation3 [shape = 's32[1]{0}', space=sflag, size = 0x4, scoped, tag = 'scoped memory for forward.1']
    #allocation4 [shape = 's32[1]{0}', space=sflag, size = 0x4, scoped, tag = 'scoped memory for forward.1']
    #allocation5 [shape = 'u8[32768]{0}', space=vmem, size = 0x8000, scoped, tag = 'input window, operand 5, single buffered']
    #allocation6 [shape = 's32[1]{0}', space=sflag, size = 0x4, scoped, tag = 'scoped memory for forward.1']
    #allocation7 [shape = 'u8[32768]{0}', space=vmem, size = 0x8000, scoped, tag = 'input window, operand 7, single buffered']
    #allocation8 [shape = 'u8[8192]{0}', space=vmem, size = 0x2000, scoped, tag = 'output window, operand 0, single buffered']
    %14 = vsyncpa [#allocation3], 0
    %15 = vsyncpa [#allocation6], 0
    %16 = vsyncpa [#allocation4], 0
    // Predicated region
    $region2: #{forward.1} parent=1 // pred_check
      _
    $region3: #{forward.1} parent=1 // pred_check_branch
      %18 = sbr.rel (0) target = $region5
    $region4: #{forward.1} parent=1 // pred_region
      _
    $region5: #{forward.1} parent=1 // pred_fallthru
      _
    // Predicated region
    $region6: #{forward.1} parent=1 // pred_check
      _
    $region7: #{forward.1} parent=1 // pred_check_branch
      %20 = sbr.rel (0) target = $region9
    $region8: #{forward.1} parent=1 // pred_region
      _
    $region9: #{forward.1} parent=1 // pred_fallthru
      _
    // Predicated region
    $region10: #{forward.1} parent=1 // pred_check
      _
    $region11: #{forward.1} parent=1 // pred_check_branch
      %22 = sbr.rel (0) target = $region13
    $region12: #{forward.1} parent=1 // pred_region
      _
    $region13: #{forward.1} parent=1 // pred_fallthru
      _
    // Predicated region
    $region14: #{forward.1} parent=1 // pred_check
      _
    $region15: #{forward.1} parent=1 // pred_check_branch
      %24 = sbr.rel (0) target = $region17
    $region16: #{forward.1} parent=1 // pred_region
      %s26 = ssub.s32 1024, 1024
      %27 = vsyncadd [#allocation3], %s26
      %s28 = sshll.u32 [#allocation2], 4
      %s29 = int_to_ptr.vmem [resolvable:$true] %s28
      %34 = dma.hbm_to_vmem [thread:$0]  %s3, 1024, %s29, [#allocation3], 64, 64, 4
    $region17: #{forward.1} parent=1 // pred_fallthru
      _
    // Predicated region
    $region18: #{forward.1} parent=1 // pred_check
      _
    $region19: #{forward.1} parent=1 // pred_check_branch
      %36 = sbr.rel (0) target = $region21
    $region20: #{forward.1} parent=1 // pred_region
      _
    $region21: #{forward.1} parent=1 // pred_fallthru
      _
    // Predicated region
    $region22: #{forward.1} parent=1 // pred_check
      _
    $region23: #{forward.1} parent=1 // pred_check_branch
      %38 = sbr.rel (0) target = $region25
    $region24: #{forward.1} parent=1 // pred_region
      %s40 = ssub.s32 1024, 1024
      %41 = vsyncadd [#allocation6], %s40
      %s42 = sshll.u32 [#allocation5], 4
      %s43 = int_to_ptr.vmem [resolvable:$true] %s42
      %48 = dma.hbm_to_vmem [thread:$0]  %s5, 1024, %s43, [#allocation6], 64, 64, 4
    $region25: #{forward.1} parent=1 // pred_fallthru
      _
    // Predicated region
    $region26: #{forward.1} parent=1 // pred_check
      _
    $region27: #{forward.1} parent=1 // pred_check_branch
      %50 = sbr.rel (0) target = $region29
    $region28: #{forward.1} parent=1 // pred_region
      _
    $region29: #{forward.1} parent=1 // pred_fallthru
      _
    // Predicated region
    $region30: #{forward.1} parent=1 // pred_check
      _
    $region31: #{forward.1} parent=1 // pred_check_branch
      %52 = sbr.rel (0) target = $region33
    $region32: #{forward.1} parent=1 // pred_region
      %s54 = ssub.s32 1024, 1024
      %55 = vsyncadd [#allocation6], %s54
      %s56 = sshll.u32 [#allocation7], 4
      %s57 = int_to_ptr.vmem [resolvable:$true] %s56
      %62 = dma.hbm_to_vmem [thread:$0]  %s7, 1024, %s57, [#allocation6], 64, 64, 4
    $region33: #{forward.1} parent=1 // pred_fallthru
      _
    // Predicated region
    $region34: #{forward.1} parent=1 // pred_check
      _
    $region35: #{forward.1} parent=1 // pred_check_branch
      %64 = sbr.rel (0) target = $region37
    $region36: #{forward.1} parent=1 // pred_region
      _
    $region37: #{forward.1} parent=1 // pred_fallthru
      _
    // Predicated region
    $region38: #{forward.1} parent=1 // pred_check
      _
    $region39: #{forward.1} parent=1 // pred_check_branch
      %66 = sbr.rel (0) target = $region41
    $region40: #{forward.1} parent=1 // pred_region
      %67 = dma.done [#allocation3], 1024
    $region41: #{forward.1} parent=1 // pred_fallthru
      _
    // Predicated region
    $region42: #{forward.1} parent=1 // pred_check
      _
    $region43: #{forward.1} parent=1 // pred_check_branch
      %69 = sbr.rel (0) target = $region45
    $region44: #{forward.1} parent=1 // pred_region
      %70 = dma.done [#allocation6], 1024
    $region45: #{forward.1} parent=1 // pred_fallthru
      _
    // Predicated region
    $region46: #{forward.1} parent=1 // pred_check
      _
    $region47: #{forward.1} parent=1 // pred_check_branch
      %72 = sbr.rel (0) target = $region49
    $region48: #{forward.1} parent=1 // pred_region
      %73 = dma.done [#allocation6], 1024
    $region49: #{forward.1} parent=1 // pred_fallthru
      _
    %v75 = vld [vmem:[%s0] sm:$0xf]
    %v76 = vld [vmem:[%s0 + $0x4] sm:$0xf]
    %v77 = vld [vmem:[%s1] sm:$0xf]
    %v78 = vld [vmem:[%s1 + $0x4] sm:$0xf]
    %v79 = vld [vmem:[%s2] sm:$0x1]
    %v81 = vlaneseq
    %v82 = vshrl.u32 %v81, 7
    %v83 = vsub.s32 0, %v82
    %v84 = vrot.slane %v79, %v83
    %v88 = vunpack.c.l.b16 %v75
    %v89 = vunpack.c.l.b16 %v76
    %v90 = vpack.c.b16 %v89, %v88
    %v93 = vunpack.c.l.b16 %v77
    %v94 = vunpack.c.l.b16 %v78
    %v95 = vpack.c.b16 %v94, %v93
    %vm97 = vcmask 130048
    %v99 = vsel %vm97, %v90, 0
    %101 = vmatprep.subr.bf16.mxu0 0
    %102 = vmatpush1.bf16.msra.mxu0 0
    %103 = vmatprep.subr.bf16.mxu0 0
    %104 = vmatpush1.bf16.msra.mxu0 0
    %105 = vmatprep.subr.bf16.mxu0 0
    %106 = vmatpush1.bf16.msra.mxu0 0
    %107 = vmatprep.subr.bf16.mxu0 0
    %108 = vmatpush1.bf16.msra.mxu0 0
    %109 = vmatprep.subr.bf16.mxu0 0
    %110 = vmatpush1.bf16.msra.mxu0 0
    %111 = vmatprep.subr.bf16.mxu0 0
    %112 = vmatpush1.bf16.msra.mxu0 0
    %113 = vmatprep.subr.bf16.mxu0 0
    %114 = vmatpush1.bf16.msra.mxu0 0
    %115 = vmatprep.subr.bf16.mxu0 0
    %116 = vmatpush1.bf16.msra.mxu0 %v95
    %117 = vmatprep.subr.bf16.mxu0 0
    %118 = vmatpush2.bf16.msra.mxu0 0
    %119 = vmatprep.subr.bf16.mxu0 0
    %120 = vmatpush2.bf16.msra.mxu0 0
    %121 = vmatprep.subr.bf16.mxu0 0
    %122 = vmatpush2.bf16.msra.mxu0 0
    %123 = vmatprep.subr.bf16.mxu0 0
    %124 = vmatpush2.bf16.msra.mxu0 0
    %125 = vmatprep.subr.bf16.mxu0 0
    %126 = vmatpush2.bf16.msra.mxu0 0
    %127 = vmatprep.subr.bf16.mxu0 0
    %128 = vmatpush2.bf16.msra.mxu0 0
    %129 = vmatprep.subr.bf16.mxu0 0
    %130 = vmatpush2.bf16.msra.mxu0 0
    %131 = vmatprep.subr.bf16.mxu0 0
    %132 = vmatpush2.bf16.msra.mxu0 0
    %133 = vmatprep.mubr.bf16.mxu0 0
    %134 = vmatmul.mubr.bf16.gmra.mxu0 %v99
    %v135 = vpop.f32.mrf.mxu0
    %v136 = vadd.f32 %v84, %v135
    %v137 = vpop.f32.mrf.mxu0
    %v138 = vpop.f32.mrf.mxu0
    %v139 = vadd.f32 %v84, %v138
    %v140 = vpop.f32.mrf.mxu0
    %141 = vdwg.mxu0
    %v142 = vmax.f32 %v136, 0.0
    %v143 = vmax.f32 %v139, 0.0
    %v144 = vpack.c.bf16 %v143, %v142
    %v145 = vld [vmem:[#allocation2] sm:$0xf]
    %v146 = vld [vmem:[#allocation2 + $0x4] sm:$0xf]
    %v147 = vld [vmem:[#allocation2 + $0x8] sm:$0xf]
    %v148 = vld [vmem:[#allocation2 + $0xc] sm:$0xf]
    %v149 = vld [vmem:[#allocation2 + $0x10] sm:$0xf]
    %v150 = vld [vmem:[#allocation2 + $0x14] sm:$0xf]
    %v151 = vld [vmem:[#allocation2 + $0x18] sm:$0xf]
    %v152 = vld [vmem:[#allocation2 + $0x1c] sm:$0xf]
    %v153 = vld [vmem:[#allocation2 + $0x20] sm:$0xf]
    %v154 = vld [vmem:[#allocation2 + $0x24] sm:$0xf]
    %v155 = vld [vmem:[#allocation2 + $0x28] sm:$0xf]
    %v156 = vld [vmem:[#allocation2 + $0x2c] sm:$0xf]
    %v157 = vld [vmem:[#allocation2 + $0x30] sm:$0xf]
    %v158 = vld [vmem:[#allocation2 + $0x34] sm:$0xf]
    %v159 = vld [vmem:[#allocation2 + $0x38] sm:$0xf]
    %v160 = vld [vmem:[#allocation2 + $0x3c] sm:$0xf]
    %v161 = vld [vmem:[%s4] sm:$0x1]
    %v163 = vlaneseq
    %v164 = vshrl.u32 %v163, 7
    %v165 = vsub.s32 0, %v164
    %v166 = vrot.slane %v161, %v165
    %v184 = vunpack.c.l.b16 %v145
    %v185 = vunpack.c.l.b16 %v146
    %v186 = vunpack.c.l.b16 %v147
    %v187 = vunpack.c.l.b16 %v148
    %v188 = vunpack.c.l.b16 %v149
    %v189 = vunpack.c.l.b16 %v150
    %v190 = vunpack.c.l.b16 %v151
    %v191 = vunpack.c.l.b16 %v152
    %v192 = vunpack.c.l.b16 %v153
    %v193 = vunpack.c.l.b16 %v154
    %v194 = vunpack.c.l.b16 %v155
    %v195 = vunpack.c.l.b16 %v156
    %v196 = vunpack.c.l.b16 %v157
    %v197 = vunpack.c.l.b16 %v158
    %v198 = vunpack.c.l.b16 %v159
    %v199 = vunpack.c.l.b16 %v160
    %v200 = vpack.c.b16 %v185, %v184
    %v201 = vpack.c.b16 %v187, %v186
    %v202 = vpack.c.b16 %v189, %v188
    %v203 = vpack.c.b16 %v191, %v190
    %v204 = vpack.c.b16 %v193, %v192
    %v205 = vpack.c.b16 %v195, %v194
    %v206 = vpack.c.b16 %v197, %v196
    %v207 = vpack.c.b16 %v199, %v198
    %216 = vmatprep.subr.bf16.mxu0 0
    %217 = vmatpush1.bf16.msra.mxu0 %v207
    %218 = vmatprep.subr.bf16.mxu0 0
    %219 = vmatpush1.bf16.msra.mxu0 %v206
    %220 = vmatprep.subr.bf16.mxu0 0
    %221 = vmatpush1.bf16.msra.mxu0 %v205
    %222 = vmatprep.subr.bf16.mxu0 0
    %223 = vmatpush1.bf16.msra.mxu0 %v204
    %224 = vmatprep.subr.bf16.mxu0 0
    %225 = vmatpush1.bf16.msra.mxu0 %v203
    %226 = vmatprep.subr.bf16.mxu0 0
    %227 = vmatpush1.bf16.msra.mxu0 %v202
    %228 = vmatprep.subr.bf16.mxu0 0
    %229 = vmatpush1.bf16.msra.mxu0 %v201
    %230 = vmatprep.subr.bf16.mxu0 0
    %231 = vmatpush1.bf16.msra.mxu0 %v200
    %232 = vmatprep.subr.bf16.mxu0 0
    %233 = vmatpush2.bf16.msra.mxu0 0
    %234 = vmatprep.subr.bf16.mxu0 0
    %235 = vmatpush2.bf16.msra.mxu0 0
    %236 = vmatprep.subr.bf16.mxu0 0
    %237 = vmatpush2.bf16.msra.mxu0 0
    %238 = vmatprep.subr.bf16.mxu0 0
    %239 = vmatpush2.bf16.msra.mxu0 0
    %240 = vmatprep.subr.bf16.mxu0 0
    %241 = vmatpush2.bf16.msra.mxu0 0
    %242 = vmatprep.subr.bf16.mxu0 0
    %243 = vmatpush2.bf16.msra.mxu0 0
    %244 = vmatprep.subr.bf16.mxu0 0
    %245 = vmatpush2.bf16.msra.mxu0 0
    %246 = vmatprep.subr.bf16.mxu0 0
    %247 = vmatpush2.bf16.msra.mxu0 0
    %248 = vmatprep.mubr.bf16.mxu0 0
    %249 = vmatmul.mubr.bf16.gmra.mxu0 %v144
    %v250 = vpop.f32.mrf.mxu0
    %v251 = vadd.f32 %v166, %v250
    %v252 = vpop.f32.mrf.mxu0
    %v253 = vpop.f32.mrf.mxu0
    %v254 = vadd.f32 %v166, %v253
    %v255 = vpop.f32.mrf.mxu0
    %256 = vdwg.mxu0
    %v257 = vmax.f32 %v251, 0.0
    %v258 = vmax.f32 %v254, 0.0
    %v259 = vpack.c.bf16 %v258, %v257
    %v260 = vld [vmem:[#allocation5] sm:$0xf]
    %v261 = vld [vmem:[#allocation5 + $0x4] sm:$0xf]
    %v262 = vld [vmem:[#allocation5 + $0x8] sm:$0xf]
    %v263 = vld [vmem:[#allocation5 + $0xc] sm:$0xf]
    %v264 = vld [vmem:[#allocation5 + $0x10] sm:$0xf]
    %v265 = vld [vmem:[#allocation5 + $0x14] sm:$0xf]
    %v266 = vld [vmem:[#allocation5 + $0x18] sm:$0xf]
    %v267 = vld [vmem:[#allocation5 + $0x1c] sm:$0xf]
    %v268 = vld [vmem:[#allocation5 + $0x20] sm:$0xf]
    %v269 = vld [vmem:[#allocation5 + $0x24] sm:$0xf]
    %v270 = vld [vmem:[#allocation5 + $0x28] sm:$0xf]
    %v271 = vld [vmem:[#allocation5 + $0x2c] sm:$0xf]
    %v272 = vld [vmem:[#allocation5 + $0x30] sm:$0xf]
    %v273 = vld [vmem:[#allocation5 + $0x34] sm:$0xf]
    %v274 = vld [vmem:[#allocation5 + $0x38] sm:$0xf]
    %v275 = vld [vmem:[#allocation5 + $0x3c] sm:$0xf]
    %v276 = vld [vmem:[%s6] sm:$0x1]
    %v278 = vlaneseq
    %v279 = vshrl.u32 %v278, 7
    %v280 = vsub.s32 0, %v279
    %v281 = vrot.slane %v276, %v280
    %v299 = vunpack.c.l.b16 %v260
    %v300 = vunpack.c.l.b16 %v261
    %v301 = vunpack.c.l.b16 %v262
    %v302 = vunpack.c.l.b16 %v263
    %v303 = vunpack.c.l.b16 %v264
    %v304 = vunpack.c.l.b16 %v265
    %v305 = vunpack.c.l.b16 %v266
    %v306 = vunpack.c.l.b16 %v267
    %v307 = vunpack.c.l.b16 %v268
    %v308 = vunpack.c.l.b16 %v269
    %v309 = vunpack.c.l.b16 %v270
    %v310 = vunpack.c.l.b16 %v271
    %v311 = vunpack.c.l.b16 %v272
    %v312 = vunpack.c.l.b16 %v273
    %v313 = vunpack.c.l.b16 %v274
    %v314 = vunpack.c.l.b16 %v275
    %v315 = vpack.c.b16 %v300, %v299
    %v316 = vpack.c.b16 %v302, %v301
    %v317 = vpack.c.b16 %v304, %v303
    %v318 = vpack.c.b16 %v306, %v305
    %v319 = vpack.c.b16 %v308, %v307
    %v320 = vpack.c.b16 %v310, %v309
    %v321 = vpack.c.b16 %v312, %v311
    %v322 = vpack.c.b16 %v314, %v313
    %331 = vmatprep.subr.bf16.mxu0 0
    %332 = vmatpush1.bf16.msra.mxu0 %v322
    %333 = vmatprep.subr.bf16.mxu0 0
    %334 = vmatpush1.bf16.msra.mxu0 %v321
    %335 = vmatprep.subr.bf16.mxu0 0
    %336 = vmatpush1.bf16.msra.mxu0 %v320
    %337 = vmatprep.subr.bf16.mxu0 0
    %338 = vmatpush1.bf16.msra.mxu0 %v319
    %339 = vmatprep.subr.bf16.mxu0 0
    %340 = vmatpush1.bf16.msra.mxu0 %v318
    %341 = vmatprep.subr.bf16.mxu0 0
    %342 = vmatpush1.bf16.msra.mxu0 %v317
    %343 = vmatprep.subr.bf16.mxu0 0
    %344 = vmatpush1.bf16.msra.mxu0 %v316
    %345 = vmatprep.subr.bf16.mxu0 0
    %346 = vmatpush1.bf16.msra.mxu0 %v315
    %347 = vmatprep.subr.bf16.mxu0 0
    %348 = vmatpush2.bf16.msra.mxu0 0
    %349 = vmatprep.subr.bf16.mxu0 0
    %350 = vmatpush2.bf16.msra.mxu0 0
    %351 = vmatprep.subr.bf16.mxu0 0
    %352 = vmatpush2.bf16.msra.mxu0 0
    %353 = vmatprep.subr.bf16.mxu0 0
    %354 = vmatpush2.bf16.msra.mxu0 0
    %355 = vmatprep.subr.bf16.mxu0 0
    %356 = vmatpush2.bf16.msra.mxu0 0
    %357 = vmatprep.subr.bf16.mxu0 0
    %358 = vmatpush2.bf16.msra.mxu0 0
    %359 = vmatprep.subr.bf16.mxu0 0
    %360 = vmatpush2.bf16.msra.mxu0 0
    %361 = vmatprep.subr.bf16.mxu0 0
    %362 = vmatpush2.bf16.msra.mxu0 0
    %363 = vmatprep.mubr.bf16.mxu0 0
    %364 = vmatmul.mubr.bf16.gmra.mxu0 %v259
    %v365 = vpop.f32.mrf.mxu0
    %v366 = vadd.f32 %v281, %v365
    %v367 = vpop.f32.mrf.mxu0
    %v368 = vpop.f32.mrf.mxu0
    %v369 = vadd.f32 %v281, %v368
    %v370 = vpop.f32.mrf.mxu0
    %371 = vdwg.mxu0
    %v372 = vmax.f32 %v366, 0.0
    %v373 = vmax.f32 %v369, 0.0
    %v374 = vpack.c.bf16 %v373, %v372
    %v375 = vld [vmem:[#allocation7] sm:$0xf]
    %v376 = vld [vmem:[#allocation7 + $0x4] sm:$0xf]
    %v377 = vld [vmem:[#allocation7 + $0x8] sm:$0xf]
    %v378 = vld [vmem:[#allocation7 + $0xc] sm:$0xf]
    %v379 = vld [vmem:[#allocation7 + $0x10] sm:$0xf]
    %v380 = vld [vmem:[#allocation7 + $0x14] sm:$0xf]
    %v381 = vld [vmem:[#allocation7 + $0x18] sm:$0xf]
    %v382 = vld [vmem:[#allocation7 + $0x1c] sm:$0xf]
    %v383 = vld [vmem:[#allocation7 + $0x20] sm:$0xf]
    %v384 = vld [vmem:[#allocation7 + $0x24] sm:$0xf]
    %v385 = vld [vmem:[#allocation7 + $0x28] sm:$0xf]
    %v386 = vld [vmem:[#allocation7 + $0x2c] sm:$0xf]
    %v387 = vld [vmem:[#allocation7 + $0x30] sm:$0xf]
    %v388 = vld [vmem:[#allocation7 + $0x34] sm:$0xf]
    %v389 = vld [vmem:[#allocation7 + $0x38] sm:$0xf]
    %v390 = vld [vmem:[#allocation7 + $0x3c] sm:$0xf]
    %v391 = vld [vmem:[%s8] sm:$0x1]
    %v393 = vlaneseq
    %v394 = vshrl.u32 %v393, 7
    %v395 = vsub.s32 0, %v394
    %v396 = vrot.slane %v391, %v395
    %v414 = vunpack.c.l.b16 %v375
    %v415 = vunpack.c.l.b16 %v376
    %v416 = vunpack.c.l.b16 %v377
    %v417 = vunpack.c.l.b16 %v378
    %v418 = vunpack.c.l.b16 %v379
    %v419 = vunpack.c.l.b16 %v380
    %v420 = vunpack.c.l.b16 %v381
    %v421 = vunpack.c.l.b16 %v382
    %v422 = vunpack.c.l.b16 %v383
    %v423 = vunpack.c.l.b16 %v384
    %v424 = vunpack.c.l.b16 %v385
    %v425 = vunpack.c.l.b16 %v386
    %v426 = vunpack.c.l.b16 %v387
    %v427 = vunpack.c.l.b16 %v388
    %v428 = vunpack.c.l.b16 %v389
    %v429 = vunpack.c.l.b16 %v390
    %v430 = vpack.c.b16 %v415, %v414
    %v431 = vpack.c.b16 %v417, %v416
    %v432 = vpack.c.b16 %v419, %v418
    %v433 = vpack.c.b16 %v421, %v420
    %v434 = vpack.c.b16 %v423, %v422
    %v435 = vpack.c.b16 %v425, %v424
    %v436 = vpack.c.b16 %v427, %v426
    %v437 = vpack.c.b16 %v429, %v428
    %446 = vmatprep.subr.bf16.mxu0 0
    %447 = vmatpush1.bf16.msra.mxu0 %v437
    %448 = vmatprep.subr.bf16.mxu0 0
    %449 = vmatpush1.bf16.msra.mxu0 %v436
    %450 = vmatprep.subr.bf16.mxu0 0
    %451 = vmatpush1.bf16.msra.mxu0 %v435
    %452 = vmatprep.subr.bf16.mxu0 0
    %453 = vmatpush1.bf16.msra.mxu0 %v434
    %454 = vmatprep.subr.bf16.mxu0 0
    %455 = vmatpush1.bf16.msra.mxu0 %v433
    %456 = vmatprep.subr.bf16.mxu0 0
    %457 = vmatpush1.bf16.msra.mxu0 %v432
    %458 = vmatprep.subr.bf16.mxu0 0
    %459 = vmatpush1.bf16.msra.mxu0 %v431
    %460 = vmatprep.subr.bf16.mxu0 0
    %461 = vmatpush1.bf16.msra.mxu0 %v430
    %462 = vmatprep.subr.bf16.mxu0 0
    %463 = vmatpush2.bf16.msra.mxu0 0
    %464 = vmatprep.subr.bf16.mxu0 0
    %465 = vmatpush2.bf16.msra.mxu0 0
    %466 = vmatprep.subr.bf16.mxu0 0
    %467 = vmatpush2.bf16.msra.mxu0 0
    %468 = vmatprep.subr.bf16.mxu0 0
    %469 = vmatpush2.bf16.msra.mxu0 0
    %470 = vmatprep.subr.bf16.mxu0 0
    %471 = vmatpush2.bf16.msra.mxu0 0
    %472 = vmatprep.subr.bf16.mxu0 0
    %473 = vmatpush2.bf16.msra.mxu0 0
    %474 = vmatprep.subr.bf16.mxu0 0
    %475 = vmatpush2.bf16.msra.mxu0 0
    %476 = vmatprep.subr.bf16.mxu0 0
    %477 = vmatpush2.bf16.msra.mxu0 0
    %478 = vmatprep.mubr.bf16.mxu0 0
    %479 = vmatmul.mubr.bf16.gmra.mxu0 %v374
    %v480 = vpop.f32.mrf.mxu0
    %v481 = vadd.f32 %v396, %v480
    %v482 = vpop.f32.mrf.mxu0
    %v483 = vpop.f32.mrf.mxu0
    %v484 = vadd.f32 %v396, %v483
    %v485 = vpop.f32.mrf.mxu0
    %486 = vdwg.mxu0
    %487 = vst [vmem:[#allocation8] sm:$0xff] %v481
    %488 = vst [vmem:[#allocation8 + $0x8] sm:$0xff] %v484
    // Predicated region
    $region50: #{forward.1} parent=1 // pred_check
      _
    $region51: #{forward.1} parent=1 // pred_check_branch
      %490 = sbr.rel (0) target = $region53
    $region52: #{forward.1} parent=1 // pred_region
      %s492 = ssub.s32 256, 256
      %493 = vsyncadd [#allocation4], %s492
      %s494 = sshll.u32 [#allocation8], 4
      %s495 = int_to_ptr.vmem [resolvable:$true] %s494
      %500 = dma.vmem_to_hbm [thread:$0]  %s495, 256, %s9, [#allocation4], 128, 128, 8
    $region53: #{forward.1} parent=1 // pred_fallthru
      _
    // Predicated region
    $region54: #{forward.1} parent=1 // pred_check
      _
    $region55: #{forward.1} parent=1 // pred_check_branch
      %502 = sbr.rel (0) target = $region57
    $region56: #{forward.1} parent=1 // pred_region
      %503 = dma.done [#allocation4], 256
    $region57: #{forward.1} parent=1 // pred_fallthru
      _
    %504 = vsyncpa [#allocation3], 1
    %505 = vsyncpa [#allocation6], 1
    %506 = vsyncpa [#allocation4], 1

// kernel: forward.1
$region0: #{forward.1}
  #allocation0 [shape = 'u32[]', space=smem, size = 0x4, offset = 0x4, fixed_abs, tag = 'smem constant byte address 0x4 - core index']
  #allocation1 [shape = 'u32[144,128]{1,0:T(1,128)}', space=vmem, size = 0x12000, scoped, tag = 'internal scratch']
  %s0 = inlined_call_operand.vmem [shape: bf16[16,16], index: 0, kind: input, shape index: {}]
  %s1 = inlined_call_operand.vmem [shape: bf16[16,128], index: 1, kind: input, shape index: {}]
  %s2 = inlined_call_operand.vmem [shape: f32[1,128], index: 2, kind: input, shape index: {}]
  %s3 = inlined_call_operand.hbm [shape: bf16[128,128], index: 3, kind: input, shape index: {}]
  %s4 = inlined_call_operand.vmem [shape: f32[1,128], index: 4, kind: input, shape index: {}]
  %s5 = inlined_call_operand.hbm [shape: bf16[128,128], index: 5, kind: input, shape index: {}]
  %s6 = inlined_call_operand.vmem [shape: f32[1,128], index: 6, kind: input, shape index: {}]
  %s7 = inlined_call_operand.hbm [shape: bf16[128,128], index: 7, kind: input, shape index: {}]
  %s8 = inlined_call_operand.vmem [shape: f32[1,128], index: 8, kind: input, shape index: {}]
  %s9 = inlined_call_operand.vmem [shape: f32[16,128], index: 9, kind: output, shape index: {}]
  %s10 = sld [smem:[#allocation0]]
  $region58: #{forward.1} parent=0
    _
  %s12 = ssub.s32 1, %s10
  %s13 = scalar_select 0, %s12, %s10
  $region1: #{forward.1} parent=0
    #allocation2 [shape = 'u8[32768]{0}', space=vmem, size = 0x8000, scoped, tag = 'input window, operand 3, single buffered']
    #allocation3 [shape = 's32[1]{0}', space=sflag, size = 0x4, scoped, tag = 'scoped memory for forward.1']
    #allocation4 [shape = 'u8[32768]{0}', space=vmem, size = 0x8000, scoped, tag = 'input window, operand 5, single buffered']
    #allocation5 [shape = 's32[1]{0}', space=sflag, size = 0x4, scoped, tag = 'scoped memory for forward.1']
    #allocation6 [shape = 'u8[32768]{0}', space=vmem, size = 0x8000, scoped, tag = 'input window, operand 7, single buffered']
    %14 = vsyncpa [#allocation3], 0
    %15 = vsyncpa [#allocation5], 0
    // Predicated region
    $region2: #{forward.1} parent=1 // pred_check
      _
    $region3: #{forward.1} parent=1 // pred_check_branch
      %17 = sbr.rel (0) target = $region5
    $region4: #{forward.1} parent=1 // pred_region
      _
    $region5: #{forward.1} parent=1 // pred_fallthru
      _
    // Predicated region
    $region6: #{forward.1} parent=1 // pred_check
      _
    $region7: #{forward.1} parent=1 // pred_check_branch
      %19 = sbr.rel (0) target = $region9
    $region8: #{forward.1} parent=1 // pred_region
      _
    $region9: #{forward.1} parent=1 // pred_fallthru
      _
    // Predicated region
    $region10: #{forward.1} parent=1 // pred_check
      _
    $region11: #{forward.1} parent=1 // pred_check_branch
      %21 = sbr.rel (0) target = $region13
    $region12: #{forward.1} parent=1 // pred_region
      _
    $region13: #{forward.1} parent=1 // pred_fallthru
      _
    // Predicated region
    $region14: #{forward.1} parent=1 // pred_check
      _
    $region15: #{forward.1} parent=1 // pred_check_branch
      %23 = sbr.rel (0) target = $region17
    $region16: #{forward.1} parent=1 // pred_region
      %s25 = ssub.s32 1024, 1024
      %26 = vsyncadd [#allocation3], %s25
      %s27 = sshll.u32 [#allocation2], 4
      %s28 = int_to_ptr.vmem [resolvable:$true] %s27
      %33 = dma.hbm_to_vmem [thread:$0]  %s3, 1024, %s28, [#allocation3], 64, 64, 4
    $region17: #{forward.1} parent=1 // pred_fallthru
      _
    // Predicated region
    $region18: #{forward.1} parent=1 // pred_check
      _
    $region19: #{forward.1} parent=1 // pred_check_branch
      %35 = sbr.rel (0) target = $region21
    $region20: #{forward.1} parent=1 // pred_region
      _
    $region21: #{forward.1} parent=1 // pred_fallthru
      _
    // Predicated region
    $region22: #{forward.1} parent=1 // pred_check
      _
    $region23: #{forward.1} parent=1 // pred_check_branch
      %37 = sbr.rel (0) target = $region25
    $region24: #{forward.1} parent=1 // pred_region
      %s39 = ssub.s32 1024, 1024
      %40 = vsyncadd [#allocation5], %s39
      %s41 = sshll.u32 [#allocation4], 4
      %s42 = int_to_ptr.vmem [resolvable:$true] %s41
      %47 = dma.hbm_to_vmem [thread:$0]  %s5, 1024, %s42, [#allocation5], 64, 64, 4
    $region25: #{forward.1} parent=1 // pred_fallthru
      _
    // Predicated region
    $region26: #{forward.1} parent=1 // pred_check
      _
    $region27: #{forward.1} parent=1 // pred_check_branch
      %49 = sbr.rel (0) target = $region29
    $region28: #{forward.1} parent=1 // pred_region
      _
    $region29: #{forward.1} parent=1 // pred_fallthru
      _
    // Predicated region
    $region30: #{forward.1} parent=1 // pred_check
      _
    $region31: #{forward.1} parent=1 // pred_check_branch
      %51 = sbr.rel (0) target = $region33
    $region32: #{forward.1} parent=1 // pred_region
      %s53 = ssub.s32 1024, 1024
      %54 = vsyncadd [#allocation5], %s53
      %s55 = sshll.u32 [#allocation6], 4
      %s56 = int_to_ptr.vmem [resolvable:$true] %s55
      %61 = dma.hbm_to_vmem [thread:$0]  %s7, 1024, %s56, [#allocation5], 64, 64, 4
    $region33: #{forward.1} parent=1 // pred_fallthru
      _
    // Predicated region
    $region34: #{forward.1} parent=1 // pred_check
      _
    $region35: #{forward.1} parent=1 // pred_check_branch
      %63 = sbr.rel (0) target = $region37
    $region36: #{forward.1} parent=1 // pred_region
      _
    $region37: #{forward.1} parent=1 // pred_fallthru
      _
    // Predicated region
    $region38: #{forward.1} parent=1 // pred_check
      _
    $region39: #{forward.1} parent=1 // pred_check_branch
      %65 = sbr.rel (0) target = $region41
    $region40: #{forward.1} parent=1 // pred_region
      %66 = dma.done [#allocation3], 1024
    $region41: #{forward.1} parent=1 // pred_fallthru
      _
    // Predicated region
    $region42: #{forward.1} parent=1 // pred_check
      _
    $region43: #{forward.1} parent=1 // pred_check_branch
      %68 = sbr.rel (0) target = $region45
    $region44: #{forward.1} parent=1 // pred_region
      %69 = dma.done [#allocation5], 1024
    $region45: #{forward.1} parent=1 // pred_fallthru
      _
    // Predicated region
    $region46: #{forward.1} parent=1 // pred_check
      _
    $region47: #{forward.1} parent=1 // pred_check_branch
      %71 = sbr.rel (0) target = $region49
    $region48: #{forward.1} parent=1 // pred_region
      %72 = dma.done [#allocation5], 1024
    $region49: #{forward.1} parent=1 // pred_fallthru
      _
    %v74 = vld [vmem:[%s0] sm:$0xf]
    %v75 = vld [vmem:[%s0 + $0x4] sm:$0xf]
    %v76 = vld [vmem:[%s1] sm:$0xf]
    %v77 = vld [vmem:[%s1 + $0x4] sm:$0xf]
    %v78 = vld [vmem:[%s2] sm:$0x1]
    %v80 = vlaneseq
    %v81 = vshrl.u32 %v80, 7
    %v82 = vsub.s32 0, %v81
    %v83 = vrot.slane %v78, %v82
    %v87 = vunpack.c.l.b16 %v74
    %v88 = vunpack.c.l.b16 %v75
    %v89 = vpack.c.b16 %v88, %v87
    %v92 = vunpack.c.l.b16 %v76
    %v93 = vunpack.c.l.b16 %v77
    %v94 = vpack.c.b16 %v93, %v92
    %vm96 = vcmask 130048
    %v98 = vsel %vm96, %v89, 0
    %100 = vmatprep.subr.bf16.mxu0 0
    %101 = vmatpush1.bf16.msra.mxu0 0
    %102 = vmatprep.subr.bf16.mxu0 0
    %103 = vmatpush1.bf16.msra.mxu0 0
    %104 = vmatprep.subr.bf16.mxu0 0
    %105 = vmatpush1.bf16.msra.mxu0 0
    %106 = vmatprep.subr.bf16.mxu0 0
    %107 = vmatpush1.bf16.msra.mxu0 0
    %108 = vmatprep.subr.bf16.mxu0 0
    %109 = vmatpush1.bf16.msra.mxu0 0
    %110 = vmatprep.subr.bf16.mxu0 0
    %111 = vmatpush1.bf16.msra.mxu0 0
    %112 = vmatprep.subr.bf16.mxu0 0
    %113 = vmatpush1.bf16.msra.mxu0 0
    %114 = vmatprep.subr.bf16.mxu0 0
    %115 = vmatpush1.bf16.msra.mxu0 %v94
    %116 = vmatprep.subr.bf16.mxu0 0
    %117 = vmatpush2.bf16.msra.mxu0 0
    %118 = vmatprep.subr.bf16.mxu0 0
    %119 = vmatpush2.bf16.msra.mxu0 0
    %120 = vmatprep.subr.bf16.mxu0 0
    %121 = vmatpush2.bf16.msra.mxu0 0
    %122 = vmatprep.subr.bf16.mxu0 0
    %123 = vmatpush2.bf16.msra.mxu0 0
    %124 = vmatprep.subr.bf16.mxu0 0
    %125 = vmatpush2.bf16.msra.mxu0 0
    %126 = vmatprep.subr.bf16.mxu0 0
    %127 = vmatpush2.bf16.msra.mxu0 0
    %128 = vmatprep.subr.bf16.mxu0 0
    %129 = vmatpush2.bf16.msra.mxu0 0
    %130 = vmatprep.subr.bf16.mxu0 0
    %131 = vmatpush2.bf16.msra.mxu0 0
    %132 = vmatprep.mubr.bf16.mxu0 0
    %133 = vmatmul.mubr.bf16.gmra.mxu0 %v98
    %v134 = vpop.f32.mrf.mxu0
    %v135 = vadd.f32 %v83, %v134
    %v136 = vpop.f32.mrf.mxu0
    %v137 = vpop.f32.mrf.mxu0
    %v138 = vadd.f32 %v83, %v137
    %v139 = vpop.f32.mrf.mxu0
    %140 = vdwg.mxu0
    %v141 = vmax.f32 %v135, 0.0
    %v142 = vmax.f32 %v138, 0.0
    %v143 = vpack.c.bf16 %v142, %v141
    %v144 = vld [vmem:[#allocation2] sm:$0xf]
    %v145 = vld [vmem:[#allocation2 + $0x4] sm:$0xf]
    %v146 = vld [vmem:[#allocation2 + $0x8] sm:$0xf]
    %v147 = vld [vmem:[#allocation2 + $0xc] sm:$0xf]
    %v148 = vld [vmem:[#allocation2 + $0x10] sm:$0xf]
    %v149 = vld [vmem:[#allocation2 + $0x14] sm:$0xf]
    %v150 = vld [vmem:[#allocation2 + $0x18] sm:$0xf]
    %v151 = vld [vmem:[#allocation2 + $0x1c] sm:$0xf]
    %v152 = vld [vmem:[#allocation2 + $0x20] sm:$0xf]
    %v153 = vld [vmem:[#allocation2 + $0x24] sm:$0xf]
    %v154 = vld [vmem:[#allocation2 + $0x28] sm:$0xf]
    %v155 = vld [vmem:[#allocation2 + $0x2c] sm:$0xf]
    %v156 = vld [vmem:[#allocation2 + $0x30] sm:$0xf]
    %v157 = vld [vmem:[#allocation2 + $0x34] sm:$0xf]
    %v158 = vld [vmem:[#allocation2 + $0x38] sm:$0xf]
    %v159 = vld [vmem:[#allocation2 + $0x3c] sm:$0xf]
    %v160 = vld [vmem:[%s4] sm:$0x1]
    %v162 = vlaneseq
    %v163 = vshrl.u32 %v162, 7
    %v164 = vsub.s32 0, %v163
    %v165 = vrot.slane %v160, %v164
    %v183 = vunpack.c.l.b16 %v144
    %v184 = vunpack.c.l.b16 %v145
    %v185 = vunpack.c.l.b16 %v146
    %v186 = vunpack.c.l.b16 %v147
    %v187 = vunpack.c.l.b16 %v148
    %v188 = vunpack.c.l.b16 %v149
    %v189 = vunpack.c.l.b16 %v150
    %v190 = vunpack.c.l.b16 %v151
    %v191 = vunpack.c.l.b16 %v152
    %v192 = vunpack.c.l.b16 %v153
    %v193 = vunpack.c.l.b16 %v154
    %v194 = vunpack.c.l.b16 %v155
    %v195 = vunpack.c.l.b16 %v156
    %v196 = vunpack.c.l.b16 %v157
    %v197 = vunpack.c.l.b16 %v158
    %v198 = vunpack.c.l.b16 %v159
    %v199 = vpack.c.b16 %v184, %v183
    %v200 = vpack.c.b16 %v186, %v185
    %v201 = vpack.c.b16 %v188, %v187
    %v202 = vpack.c.b16 %v190, %v189
    %v203 = vpack.c.b16 %v192, %v191
    %v204 = vpack.c.b16 %v194, %v193
    %v205 = vpack.c.b16 %v196, %v195
    %v206 = vpack.c.b16 %v198, %v197
    %215 = vmatprep.subr.bf16.mxu0 0
    %216 = vmatpush1.bf16.msra.mxu0 %v206
    %217 = vmatprep.subr.bf16.mxu0 0
    %218 = vmatpush1.bf16.msra.mxu0 %v205
    %219 = vmatprep.subr.bf16.mxu0 0
    %220 = vmatpush1.bf16.msra.mxu0 %v204
    %221 = vmatprep.subr.bf16.mxu0 0
    %222 = vmatpush1.bf16.msra.mxu0 %v203
    %223 = vmatprep.subr.bf16.mxu0 0
    %224 = vmatpush1.bf16.msra.mxu0 %v202
    %225 = vmatprep.subr.bf16.mxu0 0
    %226 = vmatpush1.bf16.msra.mxu0 %v201
    %227 = vmatprep.subr.bf16.mxu0 0
    %228 = vmatpush1.bf16.msra.mxu0 %v200
    %229 = vmatprep.subr.bf16.mxu0 0
    %230 = vmatpush1.bf16.msra.mxu0 %v199
    %231 = vmatprep.subr.bf16.mxu0 0
    %232 = vmatpush2.bf16.msra.mxu0 0
    %233 = vmatprep.subr.bf16.mxu0 0
    %234 = vmatpush2.bf16.msra.mxu0 0
    %235 = vmatprep.subr.bf16.mxu0 0
    %236 = vmatpush2.bf16.msra.mxu0 0
    %237 = vmatprep.subr.bf16.mxu0 0
    %238 = vmatpush2.bf16.msra.mxu0 0
    %239 = vmatprep.subr.bf16.mxu0 0
    %240 = vmatpush2.bf16.msra.mxu0 0
    %241 = vmatprep.subr.bf16.mxu0 0
    %242 = vmatpush2.bf16.msra.mxu0 0
    %243 = vmatprep.subr.bf16.mxu0 0
    %244 = vmatpush2.bf16.msra.mxu0 0
    %245 = vmatprep.subr.bf16.mxu0 0
    %246 = vmatpush2.bf16.msra.mxu0 0
    %247 = vmatprep.mubr.bf16.mxu0 0
    %248 = vmatmul.mubr.bf16.gmra.mxu0 %v143
    %v249 = vpop.f32.mrf.mxu0
    %v250 = vadd.f32 %v165, %v249
    %v251 = vpop.f32.mrf.mxu0
    %v252 = vpop.f32.mrf.mxu0
    %v253 = vadd.f32 %v165, %v252
    %v254 = vpop.f32.mrf.mxu0
    %255 = vdwg.mxu0
    %v256 = vmax.f32 %v250, 0.0
    %v257 = vmax.f32 %v253, 0.0
    %v258 = vpack.c.bf16 %v257, %v256
    %v259 = vld [vmem:[#allocation4] sm:$0xf]
    %v260 = vld [vmem:[#allocation4 + $0x4] sm:$0xf]
    %v261 = vld [vmem:[#allocation4 + $0x8] sm:$0xf]
    %v262 = vld [vmem:[#allocation4 + $0xc] sm:$0xf]
    %v263 = vld [vmem:[#allocation4 + $0x10] sm:$0xf]
    %v264 = vld [vmem:[#allocation4 + $0x14] sm:$0xf]
    %v265 = vld [vmem:[#allocation4 + $0x18] sm:$0xf]
    %v266 = vld [vmem:[#allocation4 + $0x1c] sm:$0xf]
    %v267 = vld [vmem:[#allocation4 + $0x20] sm:$0xf]
    %v268 = vld [vmem:[#allocation4 + $0x24] sm:$0xf]
    %v269 = vld [vmem:[#allocation4 + $0x28] sm:$0xf]
    %v270 = vld [vmem:[#allocation4 + $0x2c] sm:$0xf]
    %v271 = vld [vmem:[#allocation4 + $0x30] sm:$0xf]
    %v272 = vld [vmem:[#allocation4 + $0x34] sm:$0xf]
    %v273 = vld [vmem:[#allocation4 + $0x38] sm:$0xf]
    %v274 = vld [vmem:[#allocation4 + $0x3c] sm:$0xf]
    %v275 = vld [vmem:[%s6] sm:$0x1]
    %v277 = vlaneseq
    %v278 = vshrl.u32 %v277, 7
    %v279 = vsub.s32 0, %v278
    %v280 = vrot.slane %v275, %v279
    %v298 = vunpack.c.l.b16 %v259
    %v299 = vunpack.c.l.b16 %v260
    %v300 = vunpack.c.l.b16 %v261
    %v301 = vunpack.c.l.b16 %v262
    %v302 = vunpack.c.l.b16 %v263
    %v303 = vunpack.c.l.b16 %v264
    %v304 = vunpack.c.l.b16 %v265
    %v305 = vunpack.c.l.b16 %v266
    %v306 = vunpack.c.l.b16 %v267
    %v307 = vunpack.c.l.b16 %v268
    %v308 = vunpack.c.l.b16 %v269
    %v309 = vunpack.c.l.b16 %v270
    %v310 = vunpack.c.l.b16 %v271
    %v311 = vunpack.c.l.b16 %v272
    %v312 = vunpack.c.l.b16 %v273
    %v313 = vunpack.c.l.b16 %v274
    %v314 = vpack.c.b16 %v299, %v298
    %v315 = vpack.c.b16 %v301, %v300
    %v316 = vpack.c.b16 %v303, %v302
    %v317 = vpack.c.b16 %v305, %v304
    %v318 = vpack.c.b16 %v307, %v306
    %v319 = vpack.c.b16 %v309, %v308
    %v320 = vpack.c.b16 %v311, %v310
    %v321 = vpack.c.b16 %v313, %v312
    %330 = vmatprep.subr.bf16.mxu0 0
    %331 = vmatpush1.bf16.msra.mxu0 %v321
    %332 = vmatprep.subr.bf16.mxu0 0
    %333 = vmatpush1.bf16.msra.mxu0 %v320
    %334 = vmatprep.subr.bf16.mxu0 0
    %335 = vmatpush1.bf16.msra.mxu0 %v319
    %336 = vmatprep.subr.bf16.mxu0 0
    %337 = vmatpush1.bf16.msra.mxu0 %v318
    %338 = vmatprep.subr.bf16.mxu0 0
    %339 = vmatpush1.bf16.msra.mxu0 %v317
    %340 = vmatprep.subr.bf16.mxu0 0
    %341 = vmatpush1.bf16.msra.mxu0 %v316
    %342 = vmatprep.subr.bf16.mxu0 0
    %343 = vmatpush1.bf16.msra.mxu0 %v315
    %344 = vmatprep.subr.bf16.mxu0 0
    %345 = vmatpush1.bf16.msra.mxu0 %v314
    %346 = vmatprep.subr.bf16.mxu0 0
    %347 = vmatpush2.bf16.msra.mxu0 0
    %348 = vmatprep.subr.bf16.mxu0 0
    %349 = vmatpush2.bf16.msra.mxu0 0
    %350 = vmatprep.subr.bf16.mxu0 0
    %351 = vmatpush2.bf16.msra.mxu0 0
    %352 = vmatprep.subr.bf16.mxu0 0
    %353 = vmatpush2.bf16.msra.mxu0 0
    %354 = vmatprep.subr.bf16.mxu0 0
    %355 = vmatpush2.bf16.msra.mxu0 0
    %356 = vmatprep.subr.bf16.mxu0 0
    %357 = vmatpush2.bf16.msra.mxu0 0
    %358 = vmatprep.subr.bf16.mxu0 0
    %359 = vmatpush2.bf16.msra.mxu0 0
    %360 = vmatprep.subr.bf16.mxu0 0
    %361 = vmatpush2.bf16.msra.mxu0 0
    %362 = vmatprep.mubr.bf16.mxu0 0
    %363 = vmatmul.mubr.bf16.gmra.mxu0 %v258
    %v364 = vpop.f32.mrf.mxu0
    %v365 = vadd.f32 %v280, %v364
    %v366 = vpop.f32.mrf.mxu0
    %v367 = vpop.f32.mrf.mxu0
    %v368 = vadd.f32 %v280, %v367
    %v369 = vpop.f32.mrf.mxu0
    %370 = vdwg.mxu0
    %v371 = vmax.f32 %v365, 0.0
    %v372 = vmax.f32 %v368, 0.0
    %v373 = vpack.c.bf16 %v372, %v371
    %v374 = vld [vmem:[#allocation6] sm:$0xf]
    %v375 = vld [vmem:[#allocation6 + $0x4] sm:$0xf]
    %v376 = vld [vmem:[#allocation6 + $0x8] sm:$0xf]
    %v377 = vld [vmem:[#allocation6 + $0xc] sm:$0xf]
    %v378 = vld [vmem:[#allocation6 + $0x10] sm:$0xf]
    %v379 = vld [vmem:[#allocation6 + $0x14] sm:$0xf]
    %v380 = vld [vmem:[#allocation6 + $0x18] sm:$0xf]
    %v381 = vld [vmem:[#allocation6 + $0x1c] sm:$0xf]
    %v382 = vld [vmem:[#allocation6 + $0x20] sm:$0xf]
    %v383 = vld [vmem:[#allocation6 + $0x24] sm:$0xf]
    %v384 = vld [vmem:[#allocation6 + $0x28] sm:$0xf]
    %v385 = vld [vmem:[#allocation6 + $0x2c] sm:$0xf]
    %v386 = vld [vmem:[#allocation6 + $0x30] sm:$0xf]
    %v387 = vld [vmem:[#allocation6 + $0x34] sm:$0xf]
    %v388 = vld [vmem:[#allocation6 + $0x38] sm:$0xf]
    %v389 = vld [vmem:[#allocation6 + $0x3c] sm:$0xf]
    %v390 = vld [vmem:[%s8] sm:$0x1]
    %v392 = vlaneseq
    %v393 = vshrl.u32 %v392, 7
    %v394 = vsub.s32 0, %v393
    %v395 = vrot.slane %v390, %v394
    %v413 = vunpack.c.l.b16 %v374
    %v414 = vunpack.c.l.b16 %v375
    %v415 = vunpack.c.l.b16 %v376
    %v416 = vunpack.c.l.b16 %v377
    %v417 = vunpack.c.l.b16 %v378
    %v418 = vunpack.c.l.b16 %v379
    %v419 = vunpack.c.l.b16 %v380
    %v420 = vunpack.c.l.b16 %v381
    %v421 = vunpack.c.l.b16 %v382
    %v422 = vunpack.c.l.b16 %v383
    %v423 = vunpack.c.l.b16 %v384
    %v424 = vunpack.c.l.b16 %v385
    %v425 = vunpack.c.l.b16 %v386
    %v426 = vunpack.c.l.b16 %v387
    %v427 = vunpack.c.l.b16 %v388
    %v428 = vunpack.c.l.b16 %v389
    %v429 = vpack.c.b16 %v414, %v413
    %v430 = vpack.c.b16 %v416, %v415
    %v431 = vpack.c.b16 %v418, %v417
    %v432 = vpack.c.b16 %v420, %v419
    %v433 = vpack.c.b16 %v422, %v421
    %v434 = vpack.c.b16 %v424, %v423
    %v435 = vpack.c.b16 %v426, %v425
    %v436 = vpack.c.b16 %v428, %v427
    %445 = vmatprep.subr.bf16.mxu0 0
    %446 = vmatpush1.bf16.msra.mxu0 %v436
    %447 = vmatprep.subr.bf16.mxu0 0
    %448 = vmatpush1.bf16.msra.mxu0 %v435
    %449 = vmatprep.subr.bf16.mxu0 0
    %450 = vmatpush1.bf16.msra.mxu0 %v434
    %451 = vmatprep.subr.bf16.mxu0 0
    %452 = vmatpush1.bf16.msra.mxu0 %v433
    %453 = vmatprep.subr.bf16.mxu0 0
    %454 = vmatpush1.bf16.msra.mxu0 %v432
    %455 = vmatprep.subr.bf16.mxu0 0
    %456 = vmatpush1.bf16.msra.mxu0 %v431
    %457 = vmatprep.subr.bf16.mxu0 0
    %458 = vmatpush1.bf16.msra.mxu0 %v430
    %459 = vmatprep.subr.bf16.mxu0 0
    %460 = vmatpush1.bf16.msra.mxu0 %v429
    %461 = vmatprep.subr.bf16.mxu0 0
    %462 = vmatpush2.bf16.msra.mxu0 0
    %463 = vmatprep.subr.bf16.mxu0 0
    %464 = vmatpush2.bf16.msra.mxu0 0
    %465 = vmatprep.subr.bf16.mxu0 0
    %466 = vmatpush2.bf16.msra.mxu0 0
    %467 = vmatprep.subr.bf16.mxu0 0
    %468 = vmatpush2.bf16.msra.mxu0 0
    %469 = vmatprep.subr.bf16.mxu0 0
    %470 = vmatpush2.bf16.msra.mxu0 0
    %471 = vmatprep.subr.bf16.mxu0 0
    %472 = vmatpush2.bf16.msra.mxu0 0
    %473 = vmatprep.subr.bf16.mxu0 0
    %474 = vmatpush2.bf16.msra.mxu0 0
    %475 = vmatprep.subr.bf16.mxu0 0
    %476 = vmatpush2.bf16.msra.mxu0 0
    %477 = vmatprep.mubr.bf16.mxu0 0
    %478 = vmatmul.mubr.bf16.gmra.mxu0 %v373
    %v479 = vpop.f32.mrf.mxu0
    %v480 = vadd.f32 %v395, %v479
    %v481 = vpop.f32.mrf.mxu0
    %v482 = vpop.f32.mrf.mxu0
    %v483 = vadd.f32 %v395, %v482
    %v484 = vpop.f32.mrf.mxu0
    %485 = vdwg.mxu0
    %486 = vst [vmem:[%s9] sm:$0xff] %v480
    %487 = vst [vmem:[%s9 + $0x8] sm:$0xff] %v483
    // Predicated region
    $region50: #{forward.1} parent=1 // pred_check
      _
    $region51: #{forward.1} parent=1 // pred_check_branch
      %489 = sbr.rel (0) target = $region53
    $region52: #{forward.1} parent=1 // pred_region
      _
    $region53: #{forward.1} parent=1 // pred_fallthru
      _
    // Predicated region
    $region54: #{forward.1} parent=1 // pred_check
      _
    $region55: #{forward.1} parent=1 // pred_check_branch
      %491 = sbr.rel (0) target = $region57
    $region56: #{forward.1} parent=1 // pred_region
      _
    $region57: #{forward.1} parent=1 // pred_fallthru
      _
    %492 = vsyncpa [#allocation3], 1
    %493 = vsyncpa [#allocation5], 1

</llo_original>
